<compile_context>
chip_gen: v7x
topology: tpu7x:2x2x1
jax: 0.10.0
libtpu: 0.0.40
codegen_flags: <defaults>
</compile_context>

<pallas_src>
import math
import functools

import jax
import jax.numpy as jnp
from jax.experimental import pallas as pl
from jax.experimental.pallas import tpu as pltpu

LOG_STD_MAX = 2.0
LOG_STD_MIN = -20.0
_HALF_LOG_2PI = 0.5 * math.log(2.0 * math.pi)
_LOG2 = math.log(2.0)
_LANE = 128
_SUBLANE = 8


def _round_up(x, m):
    return ((x + m - 1) // m) * m


def _cdiv(a, b):
    return (a + b - 1) // b


def actor_kernel(*refs, act_dim, act_pad, act_limit, deterministic):
    if deterministic:
        (obs_ref, w1_ref, b1_ref, w2_ref, b2_ref,
         whead_ref, bhead_ref, out_ref) = refs
    else:
        (obs_ref, noise_ref, w1_ref, b1_ref, w2_ref, b2_ref,
         whead_ref, bhead_ref, out_ref) = refs

    x = obs_ref[...]                                   # (obs_dim, tb)  batch on lanes

    # net = mlp([obs_dim, h1, h2], ReLU, ReLU) -> ReLU also after the last hidden layer
    h = jnp.dot(w1_ref[...], x, preferred_element_type=jnp.float32) + b1_ref[...]
    h = jnp.maximum(h, 0.0)
    h = jnp.dot(w2_ref[...], h, preferred_element_type=jnp.float32) + b2_ref[...]
    h = jnp.maximum(h, 0.0)

    # fused mu / log_std head: one MXU launch; split lands on a sublane boundary
    head = jnp.dot(whead_ref[...], h, preferred_element_type=jnp.float32) + bhead_ref[...]
    mu = head[:act_pad, :]                             # rows >= act_dim are exactly 0
    log_std = jnp.clip(head[act_pad:, :], LOG_STD_MIN, LOG_STD_MAX)

    if deterministic:
        pi = mu
        # (pi - mu)/std == 0 -> the -0.5*z^2 term vanishes
        per_elem = -log_std
    else:
        eps = noise_ref[...]                           # (act_pad, tb), padded rows are 0
        std = jnp.exp(log_std)
        pi = mu + std * eps
        # (pi - mu)/std is exactly the injected noise -> no divide needed
        per_elem = -0.5 * eps * eps - log_std

    # shared exponential for tanh and the squash correction
    abs_pi = jnp.abs(pi)
    e = jnp.exp(-2.0 * abs_pi)
    log1p_e = jnp.log1p(e)
    sgn = jnp.where(pi >= 0.0, 1.0, -1.0)
    tanh_pi = sgn * (1.0 - e) * pl.reciprocal(1.0 + e, approx=True)
    # 2*(log2 - pi - softplus(-2*pi)) == 2*(log2 - |pi| - log1p(exp(-2|pi|)))
    corr = 2.0 * (_LOG2 - abs_pi - log1p_e)

    # padded rows (act_dim..act_pad-1): mu=0, log_std=0, eps=0 -> per_elem=0 and corr=0,
    # so they contribute nothing; constant -0.5*log(2*pi)*act_dim hoisted out of the sum.
    logp = (jnp.sum(per_elem - corr, axis=0, keepdims=True)
            - _HALF_LOG_2PI * act_dim)                 # (1, tb)

    action = act_limit * tanh_pi                       # (act_pad, tb)

    # single lane-dense full-block store: [action ; logp]
    out_ref[...] = jnp.concatenate([action[:act_dim, :], logp],
                                   axis=0).astype(out_ref.dtype)


def squashed_gaussian_actor(obs, params, noise=None, *, act_limit,
                            deterministic=False, batch_tile=4096):
    """Returns (pi_action (B, act_dim), logp_pi (B,))."""
    (w1, b1), (w2, b2), (wmu, bmu), (wls, bls) = params
    B, obs_dim = obs.shape
    hid1 = w1.shape[1]
    hid2 = w2.shape[1]
    act_dim = wmu.shape[1]
    act_pad = _round_up(act_dim, _SUBLANE)
    if not deterministic:
        assert noise is not None and noise.shape == (B, act_dim)

    # ---- weights in (out_feat, in_feat) / (out_feat, 1) layout (transpose once) ----
    w1t = jnp.asarray(w1, jnp.float32).T
    w2t = jnp.asarray(w2, jnp.float32).T
    b1t = jnp.asarray(b1, jnp.float32).reshape(hid1, 1)
    b2t = jnp.asarray(b2, jnp.float32).reshape(hid2, 1)

    # fused, sublane-aligned head: rows [0, act_pad) = mu, [act_pad, 2*act_pad) = log_std
    whead = jnp.zeros((2 * act_pad, hid2), jnp.float32)
    whead = whead.at[:act_dim, :].set(jnp.asarray(wmu, jnp.float32).T)
    whead = whead.at[act_pad:act_pad + act_dim, :].set(jnp.asarray(wls, jnp.float32).T)
    bhead = jnp.zeros((2 * act_pad, 1), jnp.float32)
    bhead = bhead.at[:act_dim, :].set(jnp.asarray(bmu, jnp.float32).reshape(act_dim, 1))
    bhead = bhead.at[act_pad:act_pad + act_dim, :].set(
        jnp.asarray(bls, jnp.float32).reshape(act_dim, 1))

    # ---- batch -> lanes: 128-aligned, balanced tiles, >=2 tiles when batch allows ----
    b_min = _round_up(max(B, 1), _LANE)
    tb_cap = min(_round_up(batch_tile, _LANE), b_min)
    num_tiles = _cdiv(b_min, tb_cap)
    if num_tiles == 1 and b_min >= 2 * _LANE:
        num_tiles = 2                       # keep both TensorCores busy on v7x
    tb = _round_up(_cdiv(b_min, num_tiles), _LANE)
    b_pad = tb * num_tiles

    obs_t = jnp.zeros((obs_dim, b_pad), jnp.float32).at[:, :B].set(
        jnp.asarray(obs, jnp.float32).T)

    args = [obs_t]
    in_specs = [pl.BlockSpec((obs_dim, tb), lambda i: (0, i))]
    if not deterministic:
        noise_t = jnp.zeros((act_pad, b_pad), jnp.float32).at[:act_dim, :B].set(
            jnp.asarray(noise, jnp.float32).T)
        args.append(noise_t)
        in_specs.append(pl.BlockSpec((act_pad, tb), lambda i: (0, i)))
    for arr in (w1t, b1t, w2t, b2t, whead, bhead):
        args.append(arr)
        in_specs.append(pl.BlockSpec(arr.shape, lambda i: (0, 0)))   # resident weights

    out_rows = act_dim + 1
    out_spec = pl.BlockSpec((out_rows, tb), lambda i: (0, i))

    flops = 2 * b_pad * (obs_dim * hid1 + hid1 * hid2 + hid2 * 2 * act_pad)
    transcendentals = b_pad * act_pad * (3 if deterministic else 4)
    bytes_accessed = 4 * (sum(int(a.size) for a in args) + b_pad * out_rows)

    kernel = functools.partial(actor_kernel,
                               act_dim=act_dim,
                               act_pad=act_pad,
                               act_limit=float(act_limit),
                               deterministic=deterministic)

    out = pl.pallas_call(
        kernel,
        out_shape=jax.ShapeDtypeStruct((out_rows, b_pad), jnp.float32),
        grid=(num_tiles,),
        in_specs=in_specs,
        out_specs=out_spec,
        compiler_params=pltpu.CompilerParams(
            dimension_semantics=("parallel",),
            vmem_limit_bytes=32 * 1024 * 1024),
        cost_estimate=pl.CostEstimate(flops=flops,
                                      transcendentals=transcendentals,
                                      bytes_accessed=bytes_accessed),
    )(*args)

    pi_action = out[:act_dim, :B].T           # (B, act_dim)
    logp_pi = out[act_dim, :B]                # (B,)
    return pi_action, logp_pi


def init_params(key, obs_dim, hidden_sizes, act_dim):
    """Deterministic synthetic init (shapes match nn.Linear of the module)."""
    sizes = [obs_dim] + list(hidden_sizes)
    params = []
    ks = jax.random.split(key, len(sizes) + 1)
    for i in range(len(sizes) - 1):
        bound = 1.0 / math.sqrt(sizes[i])
        w = jax.random.uniform(ks[i], (sizes[i], sizes[i + 1]),
                               minval=-bound, maxval=bound, dtype=jnp.float32)
        b = jax.random.uniform(jax.random.fold_in(ks[i], 1), (1, sizes[i + 1]),
                               minval=-bound, maxval=bound, dtype=jnp.float32)
        params.append((w, b))
    fan_in = sizes[-1]
    bound = 1.0 / math.sqrt(fan_in)
    for k in ks[-2:]:
        w = jax.random.uniform(k, (fan_in, act_dim),
                               minval=-bound, maxval=bound, dtype=jnp.float32)
        b = jax.random.uniform(jax.random.fold_in(k, 1), (1, act_dim),
                               minval=-bound, maxval=bound, dtype=jnp.float32)
        params.append((w, b))
    return params


def _reference(obs, noise, params, act_limit, deterministic):
    (w1, b1), (w2, b2), (wmu, bmu), (wls, bls) = params
    h = jnp.maximum(obs @ w1 + b1, 0.0)
    h = jnp.maximum(h @ w2 + b2, 0.0)
    mu = h @ wmu + bmu
    log_std = jnp.clip(h @ wls + bls, LOG_STD_MIN, LOG_STD_MAX)
    std = jnp.exp(log_std)
    pi = mu if deterministic else mu + std * noise
    z = (pi - mu) / std
    logp = jnp.sum(-0.5 * z * z - log_std - _HALF_LOG_2PI, axis=-1)
    logp -= jnp.sum(2.0 * (_LOG2 - pi - jax.nn.softplus(-2.0 * pi)), axis=-1)
    return act_limit * jnp.tanh(pi), logp


if __name__ == "__main__":
    B, obs_dim, act_dim = 8, 16, 4
    hidden_sizes = (32, 32)
    act_limit = 1.0

    root = jax.random.PRNGKey(0)
    k_obs, k_noise, k_params = jax.random.split(root, 3)

    obs = jax.random.normal(k_obs, (B, obs_dim), dtype=jnp.float32)
    noise = jax.random.normal(k_noise, (B, act_dim), dtype=jnp.float32)  # eps for rsample
    params = init_params(k_params, obs_dim, hidden_sizes, act_dim)

    # stochastic path (rsample + logprob)
    pi_action, logp_pi = squashed_gaussian_actor(
        obs, params, noise, act_limit=act_limit, deterministic=False)
    jax.block_until_ready((pi_action, logp_pi))

    ref_a, ref_l = _reference(obs, noise, params, act_limit, deterministic=False)
    assert pi_action.shape == (B, act_dim) and logp_pi.shape == (B,)
    # action uses an approx EUP reciprocal for tanh -> slightly looser tolerance
    assert bool(jnp.allclose(pi_action, ref_a, atol=2e-3, rtol=2e-3))
    assert bool(jnp.allclose(logp_pi, ref_l, atol=1e-3, rtol=1e-3))
    assert bool(jnp.all(jnp.isfinite(pi_action))) and bool(jnp.all(jnp.isfinite(logp_pi)))

    # deterministic path (separate pallas_call: no noise DMA at all)
    pi_det, logp_det = squashed_gaussian_actor(
        obs, params, act_limit=act_limit, deterministic=True)
    jax.block_until_ready((pi_det, logp_det))

    ref_ad, ref_ld = _reference(obs, None, params, act_limit, deterministic=True)
    assert bool(jnp.allclose(pi_det, ref_ad, atol=2e-3, rtol=2e-3))
    assert bool(jnp.allclose(logp_det, ref_ld, atol=1e-3, rtol=1e-3))

    print("KERNEL_OK")
</pallas_src>

<mosaic_0001>
module attributes {stable_mosaic.version = 11 : i64} {
  func.func @actor_kernel(%arg0: i32, %arg1: memref<16x128xf32, #tpu.memory_space<vmem>>, %arg2: memref<8x128xf32, #tpu.memory_space<vmem>>, %arg3: memref<32x16xf32, #tpu.memory_space<vmem>>, %arg4: memref<32x1xf32, #tpu.memory_space<vmem>>, %arg5: memref<32x32xf32, #tpu.memory_space<vmem>>, %arg6: memref<32x1xf32, #tpu.memory_space<vmem>>, %arg7: memref<16x32xf32, #tpu.memory_space<vmem>>, %arg8: memref<16x1xf32, #tpu.memory_space<vmem>>, %arg9: memref<5x128xf32, #tpu.memory_space<vmem>>) attributes {dimension_semantics = [#tpu.dimension_semantics<parallel>], iteration_bounds = array<i64: 1>, scalar_prefetch = 0 : i64, scratch_operands = 0 : i64, tpu.core_type = #tpu.core_type<tc>, window_params = [{transform_indices = @transform_0, window_bounds = array<i64: 16, 128>}, {transform_indices = @transform_1, window_bounds = array<i64: 8, 128>}, {pipeline_mode = #tpu.pipeline_mode<synchronous>, transform_indices = @transform_2, window_bounds = array<i64: 32, 16>}, {pipeline_mode = #tpu.pipeline_mode<synchronous>, transform_indices = @transform_3, window_bounds = array<i64: 32, 1>}, {pipeline_mode = #tpu.pipeline_mode<synchronous>, transform_indices = @transform_4, window_bounds = array<i64: 32, 32>}, {pipeline_mode = #tpu.pipeline_mode<synchronous>, transform_indices = @transform_5, window_bounds = array<i64: 32, 1>}, {pipeline_mode = #tpu.pipeline_mode<synchronous>, transform_indices = @transform_6, window_bounds = array<i64: 16, 32>}, {pipeline_mode = #tpu.pipeline_mode<synchronous>, transform_indices = @transform_7, window_bounds = array<i64: 16, 1>}, {transform_indices = @transform_8, window_bounds = array<i64: 5, 128>}]} {
    %c0 = arith.constant 0 : index
    %c0_0 = arith.constant 0 : index
    %0 = vector.load %arg1[%c0, %c0_0] : memref<16x128xf32, #tpu.memory_space<vmem>>, vector<16x128xf32>
    %c0_1 = arith.constant 0 : index
    %c0_2 = arith.constant 0 : index
    %1 = vector.load %arg3[%c0_1, %c0_2] : memref<32x16xf32, #tpu.memory_space<vmem>>, vector<32x16xf32>
    %cst = arith.constant dense<0.000000e+00> : vector<32x128xf32>
    %2 = tpu.matmul %1, %0, %cst {dimension_numbers = #tpu.dot_dimension_numbers<[1], [0], [0], [1], [0, 0, 1, 1], [], []>} : vector<32x16xf32>, vector<16x128xf32>, vector<32x128xf32> -> vector<32x128xf32>
    %c0_3 = arith.constant 0 : index
    %c0_4 = arith.constant 0 : index
    %3 = vector.load %arg4[%c0_3, %c0_4] : memref<32x1xf32, #tpu.memory_space<vmem>>, vector<32x1xf32>
    %4 = vector.broadcast %3 : vector<32x1xf32> to vector<32x128xf32>
    %5 = arith.addf %2, %4 : vector<32x128xf32>
    %cst_5 = arith.constant 0.000000e+00 : f32
    %6 = vector.broadcast %cst_5 : f32 to vector<32x128xf32>
    %7 = arith.maximumf %5, %6 : vector<32x128xf32>
    %c0_6 = arith.constant 0 : index
    %c0_7 = arith.constant 0 : index
    %8 = vector.load %arg5[%c0_6, %c0_7] : memref<32x32xf32, #tpu.memory_space<vmem>>, vector<32x32xf32>
    %cst_8 = arith.constant dense<0.000000e+00> : vector<32x128xf32>
    %9 = tpu.matmul %8, %7, %cst_8 {dimension_numbers = #tpu.dot_dimension_numbers<[1], [0], [0], [1], [0, 0, 1, 1], [], []>} : vector<32x32xf32>, vector<32x128xf32>, vector<32x128xf32> -> vector<32x128xf32>
    %c0_9 = arith.constant 0 : index
    %c0_10 = arith.constant 0 : index
    %10 = vector.load %arg6[%c0_9, %c0_10] : memref<32x1xf32, #tpu.memory_space<vmem>>, vector<32x1xf32>
    %11 = vector.broadcast %10 : vector<32x1xf32> to vector<32x128xf32>
    %12 = arith.addf %9, %11 : vector<32x128xf32>
    %cst_11 = arith.constant 0.000000e+00 : f32
    %13 = vector.broadcast %cst_11 : f32 to vector<32x128xf32>
    %14 = arith.maximumf %12, %13 : vector<32x128xf32>
    %c0_12 = arith.constant 0 : index
    %c0_13 = arith.constant 0 : index
    %15 = vector.load %arg7[%c0_12, %c0_13] : memref<16x32xf32, #tpu.memory_space<vmem>>, vector<16x32xf32>
    %cst_14 = arith.constant dense<0.000000e+00> : vector<16x128xf32>
    %16 = tpu.matmul %15, %14, %cst_14 {dimension_numbers = #tpu.dot_dimension_numbers<[1], [0], [0], [1], [0, 0, 1, 1], [], []>} : vector<16x32xf32>, vector<32x128xf32>, vector<16x128xf32> -> vector<16x128xf32>
    %c0_15 = arith.constant 0 : index
    %c0_16 = arith.constant 0 : index
    %17 = vector.load %arg8[%c0_15, %c0_16] : memref<16x1xf32, #tpu.memory_space<vmem>>, vector<16x1xf32>
    %18 = vector.broadcast %17 : vector<16x1xf32> to vector<16x128xf32>
    %19 = arith.addf %16, %18 : vector<16x128xf32>
    %20 = vector.extract_strided_slice %19 {offsets = [0, 0], sizes = [8, 128], strides = [1, 1]} : vector<16x128xf32> to vector<8x128xf32>
    %21 = vector.extract_strided_slice %19 {offsets = [8, 0], sizes = [8, 128], strides = [1, 1]} : vector<16x128xf32> to vector<8x128xf32>
    %cst_17 = arith.constant -2.000000e+01 : f32
    %cst_18 = arith.constant 2.000000e+00 : f32
    %22 = vector.broadcast %cst_17 : f32 to vector<8x128xf32>
    %23 = arith.maximumf %22, %21 : vector<8x128xf32>
    %24 = vector.broadcast %cst_18 : f32 to vector<8x128xf32>
    %25 = arith.minimumf %24, %23 : vector<8x128xf32>
    %c0_19 = arith.constant 0 : index
    %c0_20 = arith.constant 0 : index
    %26 = vector.load %arg2[%c0_19, %c0_20] : memref<8x128xf32, #tpu.memory_space<vmem>>, vector<8x128xf32>
    %27 = math.exp %25 : vector<8x128xf32>
    %28 = arith.mulf %27, %26 : vector<8x128xf32>
    %29 = arith.addf %20, %28 : vector<8x128xf32>
    %cst_21 = arith.constant -5.000000e-01 : f32
    %30 = vector.broadcast %cst_21 : f32 to vector<8x128xf32>
    %31 = arith.mulf %30, %26 : vector<8x128xf32>
    %32 = arith.mulf %31, %26 : vector<8x128xf32>
    %33 = arith.subf %32, %25 : vector<8x128xf32>
    %34 = math.absf %29 : vector<8x128xf32>
    %cst_22 = arith.constant -2.000000e+00 : f32
    %35 = vector.broadcast %cst_22 : f32 to vector<8x128xf32>
    %36 = arith.mulf %35, %34 : vector<8x128xf32>
    %37 = math.exp %36 : vector<8x128xf32>
    %38 = math.log1p %37 : vector<8x128xf32>
    %cst_23 = arith.constant 0.000000e+00 : f32
    %39 = vector.broadcast %cst_23 : f32 to vector<8x128xf32>
    %40 = arith.cmpf oge, %29, %39 : vector<8x128xf32>
    %cst_24 = arith.constant 1.000000e+00 : f32
    %cst_25 = arith.constant -1.000000e+00 : f32
    %41 = vector.broadcast %cst_24 : f32 to vector<8x128xf32>
    %42 = vector.broadcast %cst_25 : f32 to vector<8x128xf32>
    %43 = arith.select %40, %41, %42 : vector<8x128xi1>, vector<8x128xf32>
    %cst_26 = arith.constant 1.000000e+00 : f32
    %44 = vector.broadcast %cst_26 : f32 to vector<8x128xf32>
    %45 = arith.subf %44, %37 : vector<8x128xf32>
    %46 = arith.mulf %43, %45 : vector<8x128xf32>
    %cst_27 = arith.constant 1.000000e+00 : f32
    %47 = vector.broadcast %cst_27 : f32 to vector<8x128xf32>
    %48 = arith.addf %47, %37 : vector<8x128xf32>
    %49 = tpu.reciprocal %48 {approx = true} : vector<8x128xf32> -> vector<8x128xf32>
    %50 = arith.mulf %46, %49 : vector<8x128xf32>
    %cst_28 = arith.constant 0.693147182 : f32
    %51 = vector.broadcast %cst_28 : f32 to vector<8x128xf32>
    %52 = arith.subf %51, %34 : vector<8x128xf32>
    %53 = arith.subf %52, %38 : vector<8x128xf32>
    %cst_29 = arith.constant 2.000000e+00 : f32
    %54 = vector.broadcast %cst_29 : f32 to vector<8x128xf32>
    %55 = arith.mulf %54, %53 : vector<8x128xf32>
    %56 = arith.subf %33, %55 : vector<8x128xf32>
    %cst_30 = arith.constant dense<0.000000e+00> : vector<128xf32>
    %57 = vector.multi_reduction <add>, %56, %cst_30 [0] : vector<8x128xf32> to vector<128xf32>
    %58 = vector.shape_cast %57 : vector<128xf32> to vector<1x128xf32>
    %cst_31 = arith.constant 3.67575407 : f32
    %59 = vector.broadcast %cst_31 : f32 to vector<1x128xf32>
    %60 = arith.subf %58, %59 : vector<1x128xf32>
    %cst_32 = arith.constant 1.000000e+00 : f32
    %61 = vector.broadcast %cst_32 : f32 to vector<8x128xf32>
    %62 = arith.mulf %61, %50 : vector<8x128xf32>
    %63 = vector.extract_strided_slice %62 {offsets = [0, 0], sizes = [4, 128], strides = [1, 1]} : vector<8x128xf32> to vector<4x128xf32>
    %64 = tpu.concatenate %63, %60 in 0 : vector<4x128xf32>, vector<1x128xf32> -> vector<5x128xf32>
    %c0_33 = arith.constant 0 : index
    %c0_34 = arith.constant 0 : index
    %65 = vector.load %arg9[%c0_33, %c0_34] : memref<5x128xf32, #tpu.memory_space<vmem>>, vector<5x128xf32>
    tpu.vector_store %arg9[%c0_33, %c0_34], %64 {strides = array<i32>} : memref<5x128xf32, #tpu.memory_space<vmem>>, vector<5x128xf32>,
    return
  }
  func.func @transform_0(%arg0: i32) -> (i32, i32) {
    %c0_i32 = arith.constant 0 : i32
    %c0_i32_0 = arith.constant 0 : i32
    return %c0_i32, %arg0 : i32, i32
  }
  func.func @transform_1(%arg0: i32) -> (i32, i32) {
    %c0_i32 = arith.constant 0 : i32
    %c0_i32_0 = arith.constant 0 : i32
    return %c0_i32, %arg0 : i32, i32
  }
  func.func @transform_2(%arg0: i32) -> (i32, i32) {
    %c0_i32 = arith.constant 0 : i32
    %c0_i32_0 = arith.constant 0 : i32
    %c0_i32_1 = arith.constant 0 : i32
    return %c0_i32, %c0_i32_0 : i32, i32
  }
  func.func @transform_3(%arg0: i32) -> (i32, i32) {
    %c0_i32 = arith.constant 0 : i32
    %c0_i32_0 = arith.constant 0 : i32
    %c0_i32_1 = arith.constant 0 : i32
    return %c0_i32, %c0_i32_0 : i32, i32
  }
  func.func @transform_4(%arg0: i32) -> (i32, i32) {
    %c0_i32 = arith.constant 0 : i32
    %c0_i32_0 = arith.constant 0 : i32
    %c0_i32_1 = arith.constant 0 : i32
    return %c0_i32, %c0_i32_0 : i32, i32
  }
  func.func @transform_5(%arg0: i32) -> (i32, i32) {
    %c0_i32 = arith.constant 0 : i32
    %c0_i32_0 = arith.constant 0 : i32
    %c0_i32_1 = arith.constant 0 : i32
    return %c0_i32, %c0_i32_0 : i32, i32
  }
  func.func @transform_6(%arg0: i32) -> (i32, i32) {
    %c0_i32 = arith.constant 0 : i32
    %c0_i32_0 = arith.constant 0 : i32
    %c0_i32_1 = arith.constant 0 : i32
    return %c0_i32, %c0_i32_0 : i32, i32
  }
  func.func @transform_7(%arg0: i32) -> (i32, i32) {
    %c0_i32 = arith.constant 0 : i32
    %c0_i32_0 = arith.constant 0 : i32
    %c0_i32_1 = arith.constant 0 : i32
    return %c0_i32, %c0_i32_0 : i32, i32
  }
  func.func @transform_8(%arg0: i32) -> (i32, i32) {
    %c0_i32 = arith.constant 0 : i32
    %c0_i32_0 = arith.constant 0 : i32
    return %c0_i32, %arg0 : i32, i32
  }
}

</mosaic_0001>

<llo_original>
// kernel: tpu_custom_call.1
$region0: #{tpu_custom_call.1}
  #allocation0 [shape = 'u32[]', space=smem, size = 0x4, offset = 0x4, fixed_abs, tag = 'smem constant byte address 0x4 - core index']
  #allocation1 [shape = 'u32[144,128]{1,0:T(1,128)}', space=vmem, size = 0x12000, scoped, tag = 'internal scratch']
  %s0 = inlined_call_operand.vmem [shape: f32[16,128], index: 0, kind: input, shape index: {}]
  %s1 = inlined_call_operand.vmem [shape: f32[8,128], index: 1, kind: input, shape index: {}]
  %s2 = inlined_call_operand.vmem [shape: f32[32,16], index: 2, kind: input, shape index: {}]
  %s3 = inlined_call_operand.vmem [shape: f32[32,1], index: 3, kind: input, shape index: {}]
  %s4 = inlined_call_operand.vmem [shape: f32[32,32], index: 4, kind: input, shape index: {}]
  %s5 = inlined_call_operand.vmem [shape: f32[32,1], index: 5, kind: input, shape index: {}]
  %s6 = inlined_call_operand.vmem [shape: f32[16,32], index: 6, kind: input, shape index: {}]
  %s7 = inlined_call_operand.vmem [shape: f32[16,1], index: 7, kind: input, shape index: {}]
  %s8 = inlined_call_operand.hbm [shape: f32[5,128], index: 8, kind: output, shape index: {}]
  %s9 = sld [smem:[#allocation0]]
  $region42: #{tpu_custom_call.1} parent=0
    _
  %s11 = ssub.s32 1, %s9
  %s12 = scalar_select 0, %s11, %s9
  $region1: #{tpu_custom_call.1} parent=0
    #allocation2 [shape = 'u8[4096]{0}', space=vmem, size = 0x1000, scoped, tag = 'output window, operand 0, single buffered']
    #allocation3 [shape = 's32[1]{0}', space=sflag, size = 0x4, scoped, tag = 'scoped memory for tpu_custom_call.1']
    %13 = vsyncpa [#allocation3], 0
    // Predicated region
    $region2: #{tpu_custom_call.1} parent=1 // pred_check
      _
    $region3: #{tpu_custom_call.1} parent=1 // pred_check_branch
      %15 = sbr.rel (0) target = $region5
    $region4: #{tpu_custom_call.1} parent=1 // pred_region
      _
    $region5: #{tpu_custom_call.1} parent=1 // pred_fallthru
      _
    // Predicated region
    $region6: #{tpu_custom_call.1} parent=1 // pred_check
      _
    $region7: #{tpu_custom_call.1} parent=1 // pred_check_branch
      %17 = sbr.rel (0) target = $region9
    $region8: #{tpu_custom_call.1} parent=1 // pred_region
      _
    $region9: #{tpu_custom_call.1} parent=1 // pred_fallthru
      _
    // Predicated region
    $region10: #{tpu_custom_call.1} parent=1 // pred_check
      _
    $region11: #{tpu_custom_call.1} parent=1 // pred_check_branch
      %19 = sbr.rel (0) target = $region13
    $region12: #{tpu_custom_call.1} parent=1 // pred_region
      _
    $region13: #{tpu_custom_call.1} parent=1 // pred_fallthru
      _
    // Predicated region
    $region14: #{tpu_custom_call.1} parent=1 // pred_check
      _
    $region15: #{tpu_custom_call.1} parent=1 // pred_check_branch
      %21 = sbr.rel (0) target = $region17
    $region16: #{tpu_custom_call.1} parent=1 // pred_region
      _
    $region17: #{tpu_custom_call.1} parent=1 // pred_fallthru
      _
    // Predicated region
    $region18: #{tpu_custom_call.1} parent=1 // pred_check
      _
    $region19: #{tpu_custom_call.1} parent=1 // pred_check_branch
      %23 = sbr.rel (0) target = $region21
    $region20: #{tpu_custom_call.1} parent=1 // pred_region
      _
    $region21: #{tpu_custom_call.1} parent=1 // pred_fallthru
      _
    // Predicated region
    $region22: #{tpu_custom_call.1} parent=1 // pred_check
      _
    $region23: #{tpu_custom_call.1} parent=1 // pred_check_branch
      %25 = sbr.rel (0) target = $region25
    $region24: #{tpu_custom_call.1} parent=1 // pred_region
      _
    $region25: #{tpu_custom_call.1} parent=1 // pred_fallthru
      _
    // Predicated region
    $region26: #{tpu_custom_call.1} parent=1 // pred_check
      _
    $region27: #{tpu_custom_call.1} parent=1 // pred_check_branch
      %27 = sbr.rel (0) target = $region29
    $region28: #{tpu_custom_call.1} parent=1 // pred_region
      _
    $region29: #{tpu_custom_call.1} parent=1 // pred_fallthru
      _
    // Predicated region
    $region30: #{tpu_custom_call.1} parent=1 // pred_check
      _
    $region31: #{tpu_custom_call.1} parent=1 // pred_check_branch
      %29 = sbr.rel (0) target = $region33
    $region32: #{tpu_custom_call.1} parent=1 // pred_region
      _
    $region33: #{tpu_custom_call.1} parent=1 // pred_fallthru
      _
    %v30 = vld [vmem:[%s0] sm:$0xff]
    %v31 = vld [vmem:[%s0 + $0x8] sm:$0xff]
    %v32 = vld [vmem:[%s2] sm:$0xff]
    %v33 = vld [vmem:[%s2 + $0x8] sm:$0xff]
    %v34 = vld [vmem:[%s2 + $0x10] sm:$0xff]
    %v35 = vld [vmem:[%s2 + $0x18] sm:$0xff]
    %v36 = vld [vmem:[%s3] sm:$0xff]
    %v37 = vld [vmem:[%s3 + $0x8] sm:$0xff]
    %v38 = vld [vmem:[%s3 + $0x10] sm:$0xff]
    %v39 = vld [vmem:[%s3 + $0x18] sm:$0xff]
    %41 = vset.pattern.permute.xlu0 0
    %42 = vperm.xlu0 %41, %v36
    %v43 = vpop.permute.xlu0 %42
    %46 = vset.pattern.permute.xlu0 0
    %47 = vperm.xlu0 %46, %v37
    %v48 = vpop.permute.xlu0 %47
    %51 = vset.pattern.permute.xlu0 0
    %52 = vperm.xlu0 %51, %v38
    %v53 = vpop.permute.xlu0 %52
    %56 = vset.pattern.permute.xlu0 0
    %57 = vperm.xlu0 %56, %v39
    %v58 = vpop.permute.xlu0 %57
    %vm60 = vcmask 130048
    %v62 = vsel %vm60, %v32, 0
    %v65 = vsel %vm60, %v33, 0
    %v68 = vsel %vm60, %v34, 0
    %v71 = vsel %vm60, %v35, 0
    %73 = vmatprep.subr.mxu0 0.0
    %74 = vmatpush1.msra.mxu0 %v30
    %75 = vmatprep.subr.mxu0 0.0
    %76 = vmatpush1.msra.mxu0 %v31
    %77 = vmatprep.subr.mxu0 0.0
    %78 = vmatpush1.msra.mxu0 0.0
    %79 = vmatprep.subr.mxu0 0.0
    %80 = vmatpush1.msra.mxu0 0.0
    %81 = vmatprep.subr.mxu0 0.0
    %82 = vmatpush1.msra.mxu0 0.0
    %83 = vmatprep.subr.mxu0 0.0
    %84 = vmatpush1.msra.mxu0 0.0
    %85 = vmatprep.subr.mxu0 0.0
    %86 = vmatpush1.msra.mxu0 0.0
    %87 = vmatprep.subr.mxu0 0.0
    %88 = vmatpush1.msra.mxu0 0.0
    %89 = vmatprep.subr.mxu0 0.0
    %90 = vmatpush1.msra.mxu0 0.0
    %91 = vmatprep.subr.mxu0 0.0
    %92 = vmatpush1.msra.mxu0 0.0
    %93 = vmatprep.subr.mxu0 0.0
    %94 = vmatpush1.msra.mxu0 0.0
    %95 = vmatprep.subr.mxu0 0.0
    %96 = vmatpush1.msra.mxu0 0.0
    %97 = vmatprep.subr.mxu0 0.0
    %98 = vmatpush1.msra.mxu0 0.0
    %99 = vmatprep.subr.mxu0 0.0
    %100 = vmatpush1.msra.mxu0 0.0
    %101 = vmatprep.subr.mxu0 0.0
    %102 = vmatpush1.msra.mxu0 0.0
    %103 = vmatprep.subr.mxu0 0.0
    %104 = vmatpush1.msra.mxu0 0.0
    %105 = vmatprep.subr.mxu0 0.0
    %106 = vmatpush1.msra.mxu0 0.0
    %107 = vmatprep.subr.mxu0 0.0
    %108 = vmatpush1.msra.mxu0 0.0
    %109 = vmatprep.subr.mxu0 0.0
    %110 = vmatpush1.msra.mxu0 0.0
    %111 = vmatprep.subr.mxu0 0.0
    %112 = vmatpush1.msra.mxu0 0.0
    %113 = vmatprep.subr.mxu0 0.0
    %114 = vmatpush1.msra.mxu0 0.0
    %115 = vmatprep.subr.mxu0 0.0
    %116 = vmatpush1.msra.mxu0 0.0
    %117 = vmatprep.subr.mxu0 0.0
    %118 = vmatpush1.msra.mxu0 0.0
    %119 = vmatprep.subr.mxu0 0.0
    %120 = vmatpush1.msra.mxu0 0.0
    %121 = vmatprep.subr.mxu0 0.0
    %122 = vmatpush1.msra.mxu0 0.0
    %123 = vmatprep.subr.mxu0 0.0
    %124 = vmatpush1.msra.mxu0 0.0
    %125 = vmatprep.subr.mxu0 0.0
    %126 = vmatpush1.msra.mxu0 0.0
    %127 = vmatprep.subr.mxu0 0.0
    %128 = vmatpush1.msra.mxu0 0.0
    %129 = vmatprep.subr.mxu0 0.0
    %130 = vmatpush1.msra.mxu0 0.0
    %131 = vmatprep.subr.mxu0 0.0
    %132 = vmatpush1.msra.mxu0 0.0
    %133 = vmatprep.subr.mxu0 0.0
    %134 = vmatpush1.msra.mxu0 0.0
    %135 = vmatprep.subr.mxu0 0.0
    %136 = vmatpush1.msra.mxu0 0.0
    %137 = vmatprep.mubr.f32.mxu0 0.0
    %138 = vmatmul.mubr.f32.gmra.mrb[0].mxu0 %v62
    %v139 = vpop.f32.mrb[0].mxu0
    %v140 = vadd.f32 %v43, %v139
    %v141 = vpop.f32.mrb[0].mxu0
    %142 = vmatprep.mubr.f32.mxu0 0.0
    %143 = vmatmul.mubr.f32.gmra.mrb[0].mxu0 %v65
    %v144 = vpop.f32.mrb[0].mxu0
    %v145 = vadd.f32 %v48, %v144
    %v146 = vpop.f32.mrb[0].mxu0
    %147 = vmatprep.mubr.f32.mxu0 0.0
    %148 = vmatmul.mubr.f32.gmra.mrb[0].mxu0 %v68
    %v149 = vpop.f32.mrb[0].mxu0
    %v150 = vadd.f32 %v53, %v149
    %v151 = vpop.f32.mrb[0].mxu0
    %152 = vmatprep.mubr.f32.mxu0 0.0
    %153 = vmatmul.mubr.f32.gmra.mrb[0].mxu0 %v71
    %v154 = vpop.f32.mrb[0].mxu0
    %v155 = vadd.f32 %v58, %v154
    %v156 = vpop.f32.mrb[0].mxu0
    %157 = vdwg.mxu0
    %v158 = vmax.f32 %v140, 0.0
    %v159 = vmax.f32 %v145, 0.0
    %v160 = vmax.f32 %v150, 0.0
    %v161 = vmax.f32 %v155, 0.0
    %v162 = vld [vmem:[%s4] sm:$0xff]
    %v163 = vld [vmem:[%s4 + $0x8] sm:$0xff]
    %v164 = vld [vmem:[%s4 + $0x10] sm:$0xff]
    %v165 = vld [vmem:[%s4 + $0x18] sm:$0xff]
    %v166 = vld [vmem:[%s5] sm:$0xff]
    %v167 = vld [vmem:[%s5 + $0x8] sm:$0xff]
    %v168 = vld [vmem:[%s5 + $0x10] sm:$0xff]
    %v169 = vld [vmem:[%s5 + $0x18] sm:$0xff]
    %171 = vset.pattern.permute.xlu0 0
    %172 = vperm.xlu0 %171, %v166
    %v173 = vpop.permute.xlu0 %172
    %176 = vset.pattern.permute.xlu0 0
    %177 = vperm.xlu0 %176, %v167
    %v178 = vpop.permute.xlu0 %177
    %181 = vset.pattern.permute.xlu0 0
    %182 = vperm.xlu0 %181, %v168
    %v183 = vpop.permute.xlu0 %182
    %186 = vset.pattern.permute.xlu0 0
    %187 = vperm.xlu0 %186, %v169
    %v188 = vpop.permute.xlu0 %187
    %vm190 = vcmask 261120
    %v192 = vsel %vm190, %v162, 0
    %v195 = vsel %vm190, %v163, 0
    %v198 = vsel %vm190, %v164, 0
    %v201 = vsel %vm190, %v165, 0
    %203 = vmatprep.subr.mxu0 0.0
    %204 = vmatpush1.msra.mxu0 %v158
    %205 = vmatprep.subr.mxu0 0.0
    %206 = vmatpush1.msra.mxu0 %v159
    %207 = vmatprep.subr.mxu0 0.0
    %208 = vmatpush1.msra.mxu0 %v160
    %209 = vmatprep.subr.mxu0 0.0
    %210 = vmatpush1.msra.mxu0 %v161
    %211 = vmatprep.subr.mxu0 0.0
    %212 = vmatpush1.msra.mxu0 0.0
    %213 = vmatprep.subr.mxu0 0.0
    %214 = vmatpush1.msra.mxu0 0.0
    %215 = vmatprep.subr.mxu0 0.0
    %216 = vmatpush1.msra.mxu0 0.0
    %217 = vmatprep.subr.mxu0 0.0
    %218 = vmatpush1.msra.mxu0 0.0
    %219 = vmatprep.subr.mxu0 0.0
    %220 = vmatpush1.msra.mxu0 0.0
    %221 = vmatprep.subr.mxu0 0.0
    %222 = vmatpush1.msra.mxu0 0.0
    %223 = vmatprep.subr.mxu0 0.0
    %224 = vmatpush1.msra.mxu0 0.0
    %225 = vmatprep.subr.mxu0 0.0
    %226 = vmatpush1.msra.mxu0 0.0
    %227 = vmatprep.subr.mxu0 0.0
    %228 = vmatpush1.msra.mxu0 0.0
    %229 = vmatprep.subr.mxu0 0.0
    %230 = vmatpush1.msra.mxu0 0.0
    %231 = vmatprep.subr.mxu0 0.0
    %232 = vmatpush1.msra.mxu0 0.0
    %233 = vmatprep.subr.mxu0 0.0
    %234 = vmatpush1.msra.mxu0 0.0
    %235 = vmatprep.subr.mxu0 0.0
    %236 = vmatpush1.msra.mxu0 0.0
    %237 = vmatprep.subr.mxu0 0.0
    %238 = vmatpush1.msra.mxu0 0.0
    %239 = vmatprep.subr.mxu0 0.0
    %240 = vmatpush1.msra.mxu0 0.0
    %241 = vmatprep.subr.mxu0 0.0
    %242 = vmatpush1.msra.mxu0 0.0
    %243 = vmatprep.subr.mxu0 0.0
    %244 = vmatpush1.msra.mxu0 0.0
    %245 = vmatprep.subr.mxu0 0.0
    %246 = vmatpush1.msra.mxu0 0.0
    %247 = vmatprep.subr.mxu0 0.0
    %248 = vmatpush1.msra.mxu0 0.0
    %249 = vmatprep.subr.mxu0 0.0
    %250 = vmatpush1.msra.mxu0 0.0
    %251 = vmatprep.subr.mxu0 0.0
    %252 = vmatpush1.msra.mxu0 0.0
    %253 = vmatprep.subr.mxu0 0.0
    %254 = vmatpush1.msra.mxu0 0.0
    %255 = vmatprep.subr.mxu0 0.0
    %256 = vmatpush1.msra.mxu0 0.0
    %257 = vmatprep.subr.mxu0 0.0
    %258 = vmatpush1.msra.mxu0 0.0
    %259 = vmatprep.subr.mxu0 0.0
    %260 = vmatpush1.msra.mxu0 0.0
    %261 = vmatprep.subr.mxu0 0.0
    %262 = vmatpush1.msra.mxu0 0.0
    %263 = vmatprep.subr.mxu0 0.0
    %264 = vmatpush1.msra.mxu0 0.0
    %265 = vmatprep.subr.mxu0 0.0
    %266 = vmatpush1.msra.mxu0 0.0
    %267 = vmatprep.mubr.f32.mxu0 0.0
    %268 = vmatmul.mubr.f32.gmra.mrb[0].mxu0 %v192
    %v269 = vpop.f32.mrb[0].mxu0
    %v270 = vadd.f32 %v173, %v269
    %v271 = vpop.f32.mrb[0].mxu0
    %272 = vmatprep.mubr.f32.mxu0 0.0
    %273 = vmatmul.mubr.f32.gmra.mrb[0].mxu0 %v195
    %v274 = vpop.f32.mrb[0].mxu0
    %v275 = vadd.f32 %v178, %v274
    %v276 = vpop.f32.mrb[0].mxu0
    %277 = vmatprep.mubr.f32.mxu0 0.0
    %278 = vmatmul.mubr.f32.gmra.mrb[0].mxu0 %v198
    %v279 = vpop.f32.mrb[0].mxu0
    %v280 = vadd.f32 %v183, %v279
    %v281 = vpop.f32.mrb[0].mxu0
    %282 = vmatprep.mubr.f32.mxu0 0.0
    %283 = vmatmul.mubr.f32.gmra.mrb[0].mxu0 %v201
    %v284 = vpop.f32.mrb[0].mxu0
    %v285 = vadd.f32 %v188, %v284
    %v286 = vpop.f32.mrb[0].mxu0
    %287 = vdwg.mxu0
    %v288 = vmax.f32 %v270, 0.0
    %v289 = vmax.f32 %v275, 0.0
    %v290 = vmax.f32 %v280, 0.0
    %v291 = vmax.f32 %v285, 0.0
    %v292 = vld [vmem:[%s6] sm:$0xff]
    %v293 = vld [vmem:[%s6 + $0x8] sm:$0xff]
    %v294 = vld [vmem:[%s7] sm:$0xff]
    %v295 = vld [vmem:[%s7 + $0x8] sm:$0xff]
    %297 = vset.pattern.permute.xlu0 0
    %298 = vperm.xlu0 %297, %v294
    %v299 = vpop.permute.xlu0 %298
    %302 = vset.pattern.permute.xlu0 0
    %303 = vperm.xlu0 %302, %v295
    %v304 = vpop.permute.xlu0 %303
    %v307 = vsel %vm190, %v292, 0
    %v310 = vsel %vm190, %v293, 0
    %312 = vmatprep.subr.mxu0 0.0
    %313 = vmatpush1.msra.mxu0 %v288
    %314 = vmatprep.subr.mxu0 0.0
    %315 = vmatpush1.msra.mxu0 %v289
    %316 = vmatprep.subr.mxu0 0.0
    %317 = vmatpush1.msra.mxu0 %v290
    %318 = vmatprep.subr.mxu0 0.0
    %319 = vmatpush1.msra.mxu0 %v291
    %320 = vmatprep.subr.mxu0 0.0
    %321 = vmatpush1.msra.mxu0 0.0
    %322 = vmatprep.subr.mxu0 0.0
    %323 = vmatpush1.msra.mxu0 0.0
    %324 = vmatprep.subr.mxu0 0.0
    %325 = vmatpush1.msra.mxu0 0.0
    %326 = vmatprep.subr.mxu0 0.0
    %327 = vmatpush1.msra.mxu0 0.0
    %328 = vmatprep.subr.mxu0 0.0
    %329 = vmatpush1.msra.mxu0 0.0
    %330 = vmatprep.subr.mxu0 0.0
    %331 = vmatpush1.msra.mxu0 0.0
    %332 = vmatprep.subr.mxu0 0.0
    %333 = vmatpush1.msra.mxu0 0.0
    %334 = vmatprep.subr.mxu0 0.0
    %335 = vmatpush1.msra.mxu0 0.0
    %336 = vmatprep.subr.mxu0 0.0
    %337 = vmatpush1.msra.mxu0 0.0
    %338 = vmatprep.subr.mxu0 0.0
    %339 = vmatpush1.msra.mxu0 0.0
    %340 = vmatprep.subr.mxu0 0.0
    %341 = vmatpush1.msra.mxu0 0.0
    %342 = vmatprep.subr.mxu0 0.0
    %343 = vmatpush1.msra.mxu0 0.0
    %344 = vmatprep.subr.mxu0 0.0
    %345 = vmatpush1.msra.mxu0 0.0
    %346 = vmatprep.subr.mxu0 0.0
    %347 = vmatpush1.msra.mxu0 0.0
    %348 = vmatprep.subr.mxu0 0.0
    %349 = vmatpush1.msra.mxu0 0.0
    %350 = vmatprep.subr.mxu0 0.0
    %351 = vmatpush1.msra.mxu0 0.0
    %352 = vmatprep.subr.mxu0 0.0
    %353 = vmatpush1.msra.mxu0 0.0
    %354 = vmatprep.subr.mxu0 0.0
    %355 = vmatpush1.msra.mxu0 0.0
    %356 = vmatprep.subr.mxu0 0.0
    %357 = vmatpush1.msra.mxu0 0.0
    %358 = vmatprep.subr.mxu0 0.0
    %359 = vmatpush1.msra.mxu0 0.0
    %360 = vmatprep.subr.mxu0 0.0
    %361 = vmatpush1.msra.mxu0 0.0
    %362 = vmatprep.subr.mxu0 0.0
    %363 = vmatpush1.msra.mxu0 0.0
    %364 = vmatprep.subr.mxu0 0.0
    %365 = vmatpush1.msra.mxu0 0.0
    %366 = vmatprep.subr.mxu0 0.0
    %367 = vmatpush1.msra.mxu0 0.0
    %368 = vmatprep.subr.mxu0 0.0
    %369 = vmatpush1.msra.mxu0 0.0
    %370 = vmatprep.subr.mxu0 0.0
    %371 = vmatpush1.msra.mxu0 0.0
    %372 = vmatprep.subr.mxu0 0.0
    %373 = vmatpush1.msra.mxu0 0.0
    %374 = vmatprep.subr.mxu0 0.0
    %375 = vmatpush1.msra.mxu0 0.0
    %376 = vmatprep.mubr.f32.mxu0 0.0
    %377 = vmatmul.mubr.f32.gmra.mrb[0].mxu0 %v307
    %v378 = vpop.f32.mrb[0].mxu0
    %v379 = vadd.f32 %v299, %v378
    %v380 = vpop.f32.mrb[0].mxu0
    %381 = vmatprep.mubr.f32.mxu0 0.0
    %382 = vmatmul.mubr.f32.gmra.mrb[0].mxu0 %v310
    %v383 = vpop.f32.mrb[0].mxu0
    %v384 = vadd.f32 %v304, %v383
    %v385 = vpop.f32.mrb[0].mxu0
    %386 = vdwg.mxu0
    %v387 = vmax.f32 %v384, -20.0
    %v388 = vmin.f32 %v387, 2.0
    %v389 = vld [vmem:[%s1] sm:$0xff]
    %v390 = vmul.f32 %v388, 1.442695
    %v391 = vpow.pop %v390
    %v392 = vmul.f32 %v391, %v389
    %v393 = vadd.f32 %v379, %v392
    %v394 = vmul.f32 %v389, -0.5
    %v395 = vmul.f32 %v394, %v389
    %v396 = vsub.f32 %v395, %v388
    %v397 = vand.u32 2147483647, %v393
    %v398 = vmul.f32 %v397, -2.0
    %v399 = vmul.f32 %v398, 1.442695
    %v400 = vpow.pop %v399
    %v401 = vadd.f32 %v400, 1.0
    %v402 = vlog2.pop %v401
    %v403 = vmul.f32 %v402, 0.6931472
    %v404 = vmul.f32 -0.5, %v400
    %v405 = vadd.f32 %v404, 1.0
    %v406 = vmul.f32 %v405, %v400
    %v407 = vand.u32 2147483647, %v400
    %vm408 = vcmp.lt.f32.partialorder %v407, 0.0004427343
    %v409 = vsel %vm408, %v406, %v403
    %vm410 = vcmp.ge.f32.partialorder %v393, 0.0
    %v411 = vsel %vm410, 1.0, -1.0
    %v412 = vsub.f32 1.0, %v400
    %v413 = vmul.f32 %v411, %v412
    %v414 = vadd.f32 %v400, 1.0
    %v415 = vrcp.pop %v414
    %v416 = vmul.f32 %v413, %v415
    %v417 = vsub.f32 0.6931472, %v397
    %v418 = vsub.f32 %v417, %v409
    %v419 = vmul.f32 %v418, 2.0
    %v420 = vsub.f32 %v396, %v419
    %v421 = vrot.slane %v420, 4
    %v422 = vadd.f32 %v420, %v421
    %v423 = vrot.slane %v422, 2
    %v424 = vadd.f32 %v422, %v423
    %v425 = vrot.slane %v424, 1
    %v426 = vadd.f32 %v424, %v425
    %v427 = vsub.f32 %v426, 3.675754
    %vm428 = vcmask 1043456
    %v429 = vsel %vm428, %v416, %v427
    %430 = vst [vmem:[#allocation2] sm:$0x1f] %v429
    // Predicated region
    $region34: #{tpu_custom_call.1} parent=1 // pred_check
      _
    $region35: #{tpu_custom_call.1} parent=1 // pred_check_branch
      %432 = sbr.rel (0) target = $region37
    $region36: #{tpu_custom_call.1} parent=1 // pred_region
      %s434 = ssub.s32 128, 128
      %435 = vsyncadd [#allocation3], %s434
      %s437 = sshll.u32 [#allocation2], 4
      %s438 = int_to_ptr.vmem [resolvable:$true] %s437
      %440 = dma.vmem_to_hbm [thread:$0]  %s438, 128, %s8, [#allocation3]
    $region37: #{tpu_custom_call.1} parent=1 // pred_fallthru
      _
    // Predicated region
    $region38: #{tpu_custom_call.1} parent=1 // pred_check
      _
    $region39: #{tpu_custom_call.1} parent=1 // pred_check_branch
      %442 = sbr.rel (0) target = $region41
    $region40: #{tpu_custom_call.1} parent=1 // pred_region
      %443 = dma.done [#allocation3], 128
    $region41: #{tpu_custom_call.1} parent=1 // pred_fallthru
      _
    %444 = vsyncpa [#allocation3], 1

</llo_original>
